<compile_context>
chip_gen: v7x
topology: tpu7x:2x2x1
jax: 0.10.0
libtpu: 0.0.40
codegen_flags: <defaults>
</compile_context>

<pallas_src>
import jax
import jax.numpy as jnp
from jax.experimental import pallas as pl
from jax.experimental.pallas import tpu as pltpu

LANES = 128
SUBLANES = 8
MAX_TILE_ROWS = 8192          # 8192*128*(4+4+1) B * 2 buffers ~= 19 MiB of VMEM
NUM_SPLITS = 2                # leading "parallel" axis -> both TensorCores on v7x
VMEM_LIMIT_BYTES = 32 * 1024 * 1024   # raise v5e's 16 MiB default; native on v6e/v7x


def _make_kernel(tile_rows, acc_rows, tiles_per_split, rows_total, needs_row_mask):
    folds = tile_rows // acc_rows

    def kernel(pred_ref, true_ref, mask_ref, sum_ref, cnt_ref):
        c = pl.program_id(0)   # split (TensorCore) index
        i = pl.program_id(1)   # row-tile index within the split

        @pl.when(i == 0)
        def _init():
            sum_ref[...] = jnp.zeros_like(sum_ref)
            cnt_ref[...] = jnp.zeros_like(cnt_ref)

        p = pred_ref[...].astype(jnp.float32)
        t = true_ref[...].astype(jnp.float32)
        active = mask_ref[...] != 0

        if needs_row_mask:
            # Rows past the valid range (ragged last tile / clamped overhang
            # tile) are dropped via select, so garbage reads can't leak in.
            row_start = (c * tiles_per_split + i) * tile_rows
            row_ids = jax.lax.broadcasted_iota(
                jnp.int32, (tile_rows, LANES), 0) + row_start
            active = jnp.logical_and(active, row_ids < rows_total)

        d = p - t
        sq = jnp.where(active, d * d, 0.0)          # select, not multiply (NaN-safe)
        cnt = active.astype(jnp.float32)

        # Sublane-aligned fold (tile_rows,128) -> (acc_rows,128): pure VPU
        # vreg adds over acc_rows/8 independent chains, no per-step XLU
        # cross-lane reduction, no (1,1) serializing scalar.
        sum_ref[...] += jnp.sum(sq.reshape(folds, acc_rows, LANES), axis=0)
        cnt_ref[...] += jnp.sum(cnt.reshape(folds, acc_rows, LANES), axis=0)

    return kernel


def masked_mse_loss(y_pred: jax.Array, y_true: jax.Array, mask: jax.Array) -> jax.Array:
    """Masked MSE loss with reduction='mean'. Returns a scalar f32."""
    assert y_pred.shape == y_true.shape == mask.shape
    n = y_pred.size
    if n == 0:
        return jnp.float32(jnp.nan)  # mean over an empty selection

    pred = jnp.ravel(y_pred)                  # keep native dtype (bf16 stays bf16)
    true = jnp.ravel(y_true)
    msk = jnp.ravel(mask).astype(jnp.int8)    # 1 B/elem mask traffic

    rem = (-n) % LANES
    if rem:  # rare: numel not a multiple of 128 -> small zero tail (mask=0)
        pred = jnp.pad(pred, (0, rem))
        true = jnp.pad(true, (0, rem))
        msk = jnp.pad(msk, (0, rem))
    rows = (n + rem) // LANES

    pred2d = pred.reshape(rows, LANES)
    true2d = true.reshape(rows, LANES)
    mask2d = msk.reshape(rows, LANES)

    # Tile sizing: as large as useful, capped so small inputs use small tiles.
    tile_rows = min(MAX_TILE_ROWS, ((rows + SUBLANES - 1) // SUBLANES) * SUBLANES)
    # Accumulator height: widest multiple-of-8 divisor (<=64) of the tile ->
    # several independent vreg-add chains in the fold.
    acc_rows = max(c for c in (SUBLANES, 16, 32, 64) if tile_rows % c == 0)

    num_tiles = pl.cdiv(rows, tile_rows)
    num_splits = min(NUM_SPLITS, num_tiles)
    tiles_per_split = pl.cdiv(num_tiles, num_splits)
    needs_row_mask = (num_splits * tiles_per_split * tile_rows) != rows

    def in_idx(c, i):
        t = c * tiles_per_split + i
        return (jnp.minimum(t, num_tiles - 1), 0)  # clamp overhang tiles

    in_spec = pl.BlockSpec((tile_rows, LANES), in_idx)
    out_spec = pl.BlockSpec((acc_rows, LANES), lambda c, i: (c, 0))
    part_shape = jax.ShapeDtypeStruct((num_splits * acc_rows, LANES), jnp.float32)

    bytes_accessed = (pred2d.size * pred2d.dtype.itemsize
                      + true2d.size * true2d.dtype.itemsize
                      + mask2d.size
                      + 2 * num_splits * acc_rows * LANES * 4)

    sums, cnts = pl.pallas_call(
        _make_kernel(tile_rows, acc_rows, tiles_per_split, rows, needs_row_mask),
        out_shape=(part_shape, part_shape),
        grid_spec=pltpu.PrefetchScalarGridSpec(
            num_scalar_prefetch=0,
            grid=(num_splits, tiles_per_split),
            in_specs=[in_spec, in_spec, in_spec],
            out_specs=(out_spec, out_spec),
        ),
        compiler_params=pltpu.CompilerParams(
            dimension_semantics=("parallel", "arbitrary"),
            vmem_limit_bytes=VMEM_LIMIT_BYTES,
        ),
        cost_estimate=pl.CostEstimate(
            flops=3 * n, transcendentals=0, bytes_accessed=bytes_accessed),
    )(pred2d, true2d, mask2d)

    # Single cross-lane reduction + divide (tiny), done once in the wrapper.
    # All-zero mask -> 0/0 = NaN, matching torch's mean over an empty select.
    return jnp.sum(sums) / jnp.sum(cnts)


if __name__ == "__main__":
    key = jax.random.PRNGKey(0)
    k1, k2, k3 = jax.random.split(key, 3)

    # Small NCHW-like inputs: batch=2, channels=4, spatial=16x16
    shape = (2, 4, 16, 16)
    y_pred = jax.random.normal(k1, shape, dtype=jnp.float32)
    y_true = jax.random.normal(k2, shape, dtype=jnp.float32)
    mask = jax.random.bernoulli(k3, p=0.5, shape=shape)  # bool mask

    loss = masked_mse_loss(y_pred, y_true, mask)
    loss = jax.block_until_ready(loss)

    # reference check (pure JAX, mirrors torch.masked_select + MSE mean)
    m = mask.astype(jnp.float32)
    ref = jnp.sum((y_pred - y_true) ** 2 * m) / jnp.sum(m)
    assert jnp.allclose(loss, ref, rtol=1e-5, atol=1e-6), (loss, ref)

    print("KERNEL_OK")
</pallas_src>

<mosaic_0001>
module attributes {stable_mosaic.version = 11 : i64} {
  func.func @kernel(%arg0: i32, %arg1: i32, %arg2: memref<16x128xf32, #tpu.memory_space<vmem>>, %arg3: memref<16x128xf32, #tpu.memory_space<vmem>>, %arg4: memref<16x128xi8, #tpu.memory_space<vmem>>, %arg5: memref<16x128xf32, #tpu.memory_space<vmem>>, %arg6: memref<16x128xf32, #tpu.memory_space<vmem>>) attributes {dimension_semantics = [#tpu.dimension_semantics<parallel>, #tpu.dimension_semantics<arbitrary>], iteration_bounds = array<i64: 1, 1>, scalar_prefetch = 0 : i64, scratch_operands = 0 : i64, tpu.core_type = #tpu.core_type<tc>, window_params = [{transform_indices = @transform_0, window_bounds = array<i64: 16, 128>}, {transform_indices = @transform_1, window_bounds = array<i64: 16, 128>}, {transform_indices = @transform_2, window_bounds = array<i64: 16, 128>}, {transform_indices = @transform_3, window_bounds = array<i64: 16, 128>}, {transform_indices = @transform_4, window_bounds = array<i64: 16, 128>}]} {
    %c0_i32 = arith.constant 0 : i32
    %0 = arith.cmpi eq, %arg1, %c0_i32 : i32
    %1 = arith.extui %0 : i1 to i32
    %c0_i32_0 = arith.constant 0 : i32
    %2 = arith.cmpi ne, %1, %c0_i32_0 : i32
    scf.if %2 {
      %cst_16 = arith.constant 0.000000e+00 : f32
      %24 = vector.broadcast %cst_16 : f32 to vector<16x128xf32>
      %c0_17 = arith.constant 0 : index
      %c0_18 = arith.constant 0 : index
      %25 = vector.load %arg5[%c0_17, %c0_18] : memref<16x128xf32, #tpu.memory_space<vmem>>, vector<16x128xf32>
      tpu.vector_store %arg5[%c0_17, %c0_18], %24 {strides = array<i32>} : memref<16x128xf32, #tpu.memory_space<vmem>>, vector<16x128xf32>,
      %cst_19 = arith.constant 0.000000e+00 : f32
      %26 = vector.broadcast %cst_19 : f32 to vector<16x128xf32>
      %c0_20 = arith.constant 0 : index
      %c0_21 = arith.constant 0 : index
      %27 = vector.load %arg6[%c0_20, %c0_21] : memref<16x128xf32, #tpu.memory_space<vmem>>, vector<16x128xf32>
      tpu.vector_store %arg6[%c0_20, %c0_21], %26 {strides = array<i32>} : memref<16x128xf32, #tpu.memory_space<vmem>>, vector<16x128xf32>,
    } else {
    }
    %c0 = arith.constant 0 : index
    %c0_1 = arith.constant 0 : index
    %3 = vector.load %arg2[%c0, %c0_1] : memref<16x128xf32, #tpu.memory_space<vmem>>, vector<16x128xf32>
    %c0_2 = arith.constant 0 : index
    %c0_3 = arith.constant 0 : index
    %4 = vector.load %arg3[%c0_2, %c0_3] : memref<16x128xf32, #tpu.memory_space<vmem>>, vector<16x128xf32>
    %c0_4 = arith.constant 0 : index
    %c0_5 = arith.constant 0 : index
    %5 = vector.load %arg4[%c0_4, %c0_5] : memref<16x128xi8, #tpu.memory_space<vmem>>, vector<16x128xi8>
    %c0_i8 = arith.constant 0 : i8
    %6 = vector.broadcast %c0_i8 : i8 to vector<16x128xi8>
    %7 = arith.cmpi ne, %5, %6 : vector<16x128xi8>
    %8 = arith.subf %3, %4 : vector<16x128xf32>
    %9 = arith.mulf %8, %8 : vector<16x128xf32>
    %cst = arith.constant 0.000000e+00 : f32
    %10 = vector.broadcast %cst : f32 to vector<16x128xf32>
    %11 = arith.select %7, %9, %10 : vector<16x128xi1>, vector<16x128xf32>
    %12 = arith.extui %7 : vector<16x128xi1> to vector<16x128xi32>
    %13 = arith.sitofp %12 : vector<16x128xi32> to vector<16x128xf32>
    %c0_6 = arith.constant 0 : index
    %c0_7 = arith.constant 0 : index
    %14 = vector.load %arg5[%c0_6, %c0_7] : memref<16x128xf32, #tpu.memory_space<vmem>>, vector<16x128xf32>
    %15 = vector.shape_cast %11 : vector<16x128xf32> to vector<1x16x128xf32>
    %cst_8 = arith.constant dense<0.000000e+00> : vector<16x128xf32>
    %16 = vector.multi_reduction <add>, %15, %cst_8 [0] : vector<1x16x128xf32> to vector<16x128xf32>
    %17 = arith.addf %14, %16 : vector<16x128xf32>
    %c0_9 = arith.constant 0 : index
    %c0_10 = arith.constant 0 : index
    %18 = vector.load %arg5[%c0_9, %c0_10] : memref<16x128xf32, #tpu.memory_space<vmem>>, vector<16x128xf32>
    tpu.vector_store %arg5[%c0_9, %c0_10], %17 {strides = array<i32>} : memref<16x128xf32, #tpu.memory_space<vmem>>, vector<16x128xf32>,
    %c0_11 = arith.constant 0 : index
    %c0_12 = arith.constant 0 : index
    %19 = vector.load %arg6[%c0_11, %c0_12] : memref<16x128xf32, #tpu.memory_space<vmem>>, vector<16x128xf32>
    %20 = vector.shape_cast %13 : vector<16x128xf32> to vector<1x16x128xf32>
    %cst_13 = arith.constant dense<0.000000e+00> : vector<16x128xf32>
    %21 = vector.multi_reduction <add>, %20, %cst_13 [0] : vector<1x16x128xf32> to vector<16x128xf32>
    %22 = arith.addf %19, %21 : vector<16x128xf32>
    %c0_14 = arith.constant 0 : index
    %c0_15 = arith.constant 0 : index
    %23 = vector.load %arg6[%c0_14, %c0_15] : memref<16x128xf32, #tpu.memory_space<vmem>>, vector<16x128xf32>
    tpu.vector_store %arg6[%c0_14, %c0_15], %22 {strides = array<i32>} : memref<16x128xf32, #tpu.memory_space<vmem>>, vector<16x128xf32>,
    return
  }
  func.func @transform_0(%arg0: i32, %arg1: i32) -> (i32, i32) {
    %c1_i32 = arith.constant 1 : i32
    %0 = arith.muli %arg0, %c1_i32 : i32
    %1 = arith.addi %0, %arg1 : i32
    %c0_i32 = arith.constant 0 : i32
    %2 = arith.minsi %1, %c0_i32 : i32
    %c0_i32_0 = arith.constant 0 : i32
    %c0_i32_1 = arith.constant 0 : i32
    return %2, %c0_i32_0 : i32, i32
  }
  func.func @transform_1(%arg0: i32, %arg1: i32) -> (i32, i32) {
    %c1_i32 = arith.constant 1 : i32
    %0 = arith.muli %arg0, %c1_i32 : i32
    %1 = arith.addi %0, %arg1 : i32
    %c0_i32 = arith.constant 0 : i32
    %2 = arith.minsi %1, %c0_i32 : i32
    %c0_i32_0 = arith.constant 0 : i32
    %c0_i32_1 = arith.constant 0 : i32
    return %2, %c0_i32_0 : i32, i32
  }
  func.func @transform_2(%arg0: i32, %arg1: i32) -> (i32, i32) {
    %c1_i32 = arith.constant 1 : i32
    %0 = arith.muli %arg0, %c1_i32 : i32
    %1 = arith.addi %0, %arg1 : i32
    %c0_i32 = arith.constant 0 : i32
    %2 = arith.minsi %1, %c0_i32 : i32
    %c0_i32_0 = arith.constant 0 : i32
    %c0_i32_1 = arith.constant 0 : i32
    return %2, %c0_i32_0 : i32, i32
  }
  func.func @transform_3(%arg0: i32, %arg1: i32) -> (i32, i32) {
    %c0_i32 = arith.constant 0 : i32
    %c0_i32_0 = arith.constant 0 : i32
    return %arg0, %c0_i32 : i32, i32
  }
  func.func @transform_4(%arg0: i32, %arg1: i32) -> (i32, i32) {
    %c0_i32 = arith.constant 0 : i32
    %c0_i32_0 = arith.constant 0 : i32
    return %arg0, %c0_i32 : i32, i32
  }
}

</mosaic_0001>

<llo_original>
// kernel: tpu_custom_call.1
$region0: #{tpu_custom_call.1}
  #allocation0 [shape = 'u32[]', space=smem, size = 0x4, offset = 0x4, fixed_abs, tag = 'smem constant byte address 0x4 - core index']
  #allocation1 [shape = 'u32[144,128]{1,0:T(1,128)}', space=vmem, size = 0x12000, scoped, tag = 'internal scratch']
  %s0 = inlined_call_operand.hbm [shape: f32[16,128], index: 0, kind: input, shape index: {}]
  %s1 = inlined_call_operand.hbm [shape: f32[16,128], index: 1, kind: input, shape index: {}]
  %s2 = inlined_call_operand.vmem [shape: s8[16,128], index: 2, kind: input, shape index: {}]
  %s3 = inlined_call_operand.hbm [shape: f32[16,128], index: 3, kind: output, shape index: {0}]
  %s4 = inlined_call_operand.hbm [shape: f32[16,128], index: 4, kind: output, shape index: {1}]
  %5 = xla_tuple %s3, %s4
  %s6 = sld [smem:[#allocation0]]
  $region42: #{tpu_custom_call.1} parent=0
    _
  %s8 = ssub.s32 1, %s6
  %s9 = scalar_select 0, %s8, %s6
  $region1: #{tpu_custom_call.1} parent=0
    #allocation2 [shape = 'u8[8192]{0}', space=vmem, size = 0x2000, scoped, tag = 'input window, operand 0, single buffered']
    #allocation3 [shape = 's32[1]{0}', space=sflag, size = 0x4, scoped, tag = 'scoped memory for tpu_custom_call.1']
    #allocation4 [shape = 's32[1]{0}', space=sflag, size = 0x4, scoped, tag = 'scoped memory for tpu_custom_call.1']
    #allocation5 [shape = 'u8[8192]{0}', space=vmem, size = 0x2000, scoped, tag = 'input window, operand 1, single buffered']
    #allocation6 [shape = 's32[1]{0}', space=sflag, size = 0x4, scoped, tag = 'scoped memory for tpu_custom_call.1']
    #allocation7 [shape = 'u8[8192]{0}', space=vmem, size = 0x2000, scoped, tag = 'output window, operand 0, single buffered']
    #allocation8 [shape = 'u8[8192]{0}', space=vmem, size = 0x2000, scoped, tag = 'output window, operand 1, single buffered']
    #allocation9 [shape = 's32[1]{0}', space=sflag, size = 0x4, scoped, tag = 'scoped memory for tpu_custom_call.1']
    %10 = vsyncpa [#allocation3], 0
    %11 = vsyncpa [#allocation6], 0
    %12 = vsyncpa [#allocation4], 0
    %13 = vsyncpa [#allocation9], 0
    // Predicated region
    $region2: #{tpu_custom_call.1} parent=1 // pred_check
      _
    $region3: #{tpu_custom_call.1} parent=1 // pred_check_branch
      %15 = sbr.rel (0) target = $region5
    $region4: #{tpu_custom_call.1} parent=1 // pred_region
      %s16 = sadd.s32 0, 0
      %p17 = scmp.lt.s32.totalorder %s16, 0
      %s18 = scalar_select %p17, %s16, 0
      %s19 = smul.u32 2, %s18
      %s21 = ssub.s32 256, 256
      %22 = vsyncadd [#allocation3], %s21
      %s23 = smul.addr %s19, 128
      %s24 = scalar_lea.hbm %s0, %s23
      %s25 = sshll.u32 [#allocation2], 4
      %s26 = int_to_ptr.vmem [resolvable:$true] %s25
      %31 = dma.hbm_to_vmem [thread:$0]  %s24, 256, %s26, [#allocation3], 128, 128, 8
    $region5: #{tpu_custom_call.1} parent=1 // pred_fallthru
      _
    // Predicated region
    $region6: #{tpu_custom_call.1} parent=1 // pred_check
      _
    $region7: #{tpu_custom_call.1} parent=1 // pred_check_branch
      %33 = sbr.rel (0) target = $region9
    $region8: #{tpu_custom_call.1} parent=1 // pred_region
      %s34 = sadd.s32 0, 0
      %p35 = scmp.lt.s32.totalorder %s34, 0
      %s36 = scalar_select %p35, %s34, 0
      %s37 = smul.u32 2, %s36
      %s39 = ssub.s32 256, 256
      %40 = vsyncadd [#allocation6], %s39
      %s41 = smul.addr %s37, 128
      %s42 = scalar_lea.hbm %s1, %s41
      %s43 = sshll.u32 [#allocation5], 4
      %s44 = int_to_ptr.vmem [resolvable:$true] %s43
      %49 = dma.hbm_to_vmem [thread:$0]  %s42, 256, %s44, [#allocation6], 128, 128, 8
    $region9: #{tpu_custom_call.1} parent=1 // pred_fallthru
      _
    // Predicated region
    $region10: #{tpu_custom_call.1} parent=1 // pred_check
      _
    $region11: #{tpu_custom_call.1} parent=1 // pred_check_branch
      %51 = sbr.rel (0) target = $region13
    $region12: #{tpu_custom_call.1} parent=1 // pred_region
      %s52 = sadd.s32 0, 0
      %p53 = scmp.lt.s32.totalorder %s52, 0
      %s54 = scalar_select %p53, %s52, 0
      %s55 = smul.u32 2, %s54
      %p56 = scmp.lt.s32.totalorder %s55, 1
      %s57 = scalar_select %p56, %s55, 1
      %s58 = smul.addr %s57, 2
      %s59 = scalar_lea.vmem %s2, %s58
      %s60 = sadd.s32 0, 0
      %p61 = scmp.lt.s32.totalorder %s60, 0
      %s62 = scalar_select %p61, %s60, 0
      %s63 = smul.u32 2, %s62
    $region13: #{tpu_custom_call.1} parent=1 // pred_fallthru
      _
    // Predicated region
    $region14: #{tpu_custom_call.1} parent=1 // pred_check
      _
    $region15: #{tpu_custom_call.1} parent=1 // pred_check_branch
      %65 = sbr.rel (0) target = $region17
    $region16: #{tpu_custom_call.1} parent=1 // pred_region
      %66 = dma.done [#allocation3], 256
    $region17: #{tpu_custom_call.1} parent=1 // pred_fallthru
      _
    // Predicated region
    $region18: #{tpu_custom_call.1} parent=1 // pred_check
      _
    $region19: #{tpu_custom_call.1} parent=1 // pred_check_branch
      %68 = sbr.rel (0) target = $region21
    $region20: #{tpu_custom_call.1} parent=1 // pred_region
      %69 = dma.done [#allocation6], 256
    $region21: #{tpu_custom_call.1} parent=1 // pred_fallthru
      _
    %s70 = sadd.s32 0, 0
    %p71 = scmp.lt.s32.totalorder %s70, 0
    %s72 = scalar_select %p71, %s70, 0
    %s73 = smul.u32 2, %s72
    %p74 = scmp.lt.s32.totalorder %s73, 1
    %s75 = scalar_select %p74, %s73, 1
    %s76 = smul.addr %s75, 2
    %s77 = scalar_lea.vmem %s2, %s76
    %s78 = sadd.s32 0, 0
    %p79 = scmp.lt.s32.totalorder %s78, 0
    %s80 = scalar_select %p79, %s78, 0
    %s81 = smul.u32 2, %s80
    %s82 = sadd.s32 0, 0
    %p83 = scmp.lt.s32.totalorder %s82, 0
    %s84 = scalar_select %p83, %s82, 0
    %s85 = smul.u32 2, %s84
    %s86 = sadd.s32 0, 0
    %p87 = scmp.lt.s32.totalorder %s86, 0
    %s88 = scalar_select %p87, %s86, 0
    %s89 = smul.u32 2, %s88
    %p90 = scmp.lt.s32.totalorder %s89, 1
    %s91 = scalar_select %p90, %s89, 1
    %s92 = smul.addr %s91, 2
    %s93 = scalar_lea.vmem %s2, %s92
    %s94 = sadd.s32 0, 0
    %p95 = scmp.lt.s32.totalorder %s94, 0
    %s96 = scalar_select %p95, %s94, 0
    %s97 = smul.u32 2, %s96
    %p100 = scmp.eq.s32.totalorder 0, 0
    // Predicated region
    $region22: #{tpu_custom_call.1} parent=1 // pred_check
      %p101 = pneg %p100
    $region23: #{tpu_custom_call.1} parent=1 // pred_check_branch
      %103 = sbr.rel (%p101) target = $region25
    $region24: #{tpu_custom_call.1} parent=1 // pred_region
      %104 = vst [vmem:[#allocation7] sm:$0xff] 0.0
      %105 = vst [vmem:[#allocation7 + $0x8] sm:$0xff] 0.0
      %106 = vst [vmem:[#allocation8] sm:$0xff] 0.0
      %107 = vst [vmem:[#allocation8 + $0x8] sm:$0xff] 0.0
    $region25: #{tpu_custom_call.1} parent=1 // pred_fallthru
      _
    %v108 = vld [vmem:[#allocation2] sm:$0xff]
    %v109 = vld [vmem:[#allocation2 + $0x8] sm:$0xff]
    %v110 = vld [vmem:[#allocation5] sm:$0xff]
    %v111 = vld [vmem:[#allocation5 + $0x8] sm:$0xff]
    %v112 = vld [vmem:[%s93] sm:$0x3]
    %v113 = vld [vmem:[%s93 + $0x2] sm:$0x3]
    %vm114 = vnez %v112
    %vm115 = vnez %v113
    %v116 = vsub.f32 %v108, %v110
    %v117 = vsub.f32 %v109, %v111
    %v118 = vmul.f32 %v116, %v116
    %v119 = vmul.f32 %v117, %v117
    %v120 = vsel %vm114, 16843009, 0
    %v121 = vsel %vm115, 16843009, 0
    %v122 = vunpack.c.0.s8 %v120
    %v123 = vunpack.c.0.s8 %v121
    %vm124 = vcmp.ne.s32.totalorder %v122, 0
    %vm125 = vcmp.ne.s32.totalorder %v123, 0
    %v126 = vsel %vm124, %v118, 0.0
    %v127 = vsel %vm125, %v119, 0.0
    %v128 = vsel %vm124, 1, 0
    %v129 = vsel %vm125, 1, 0
    %v130 = vcvt.s32.f32 %v128
    %v131 = vcvt.s32.f32 %v129
    %v132 = vld [vmem:[#allocation7] sm:$0xff]
    %v133 = vld [vmem:[#allocation7 + $0x8] sm:$0xff]
    %v134 = vadd.f32 %v126, 0.0
    %v135 = vadd.f32 %v127, 0.0
    %v136 = vadd.f32 %v132, %v134
    %v137 = vadd.f32 %v133, %v135
    %138 = vst [vmem:[#allocation7] sm:$0xff] %v136
    %139 = vst [vmem:[#allocation7 + $0x8] sm:$0xff] %v137
    %v140 = vld [vmem:[#allocation8] sm:$0xff]
    %v141 = vld [vmem:[#allocation8 + $0x8] sm:$0xff]
    %v142 = vadd.f32 %v130, 0.0
    %v143 = vadd.f32 %v131, 0.0
    %v144 = vadd.f32 %v140, %v142
    %v145 = vadd.f32 %v141, %v143
    %146 = vst [vmem:[#allocation8] sm:$0xff] %v144
    %147 = vst [vmem:[#allocation8 + $0x8] sm:$0xff] %v145
    // Predicated region
    $region26: #{tpu_custom_call.1} parent=1 // pred_check
      _
    $region27: #{tpu_custom_call.1} parent=1 // pred_check_branch
      %149 = sbr.rel (0) target = $region29
    $region28: #{tpu_custom_call.1} parent=1 // pred_region
      %s151 = ssub.s32 256, 256
      %152 = vsyncadd [#allocation4], %s151
      %s153 = sshll.u32 [#allocation7], 4
      %s154 = int_to_ptr.vmem [resolvable:$true] %s153
      %159 = dma.vmem_to_hbm [thread:$0]  %s154, 256, %s3, [#allocation4], 128, 128, 8
    $region29: #{tpu_custom_call.1} parent=1 // pred_fallthru
      _
    // Predicated region
    $region30: #{tpu_custom_call.1} parent=1 // pred_check
      _
    $region31: #{tpu_custom_call.1} parent=1 // pred_check_branch
      %161 = sbr.rel (0) target = $region33
    $region32: #{tpu_custom_call.1} parent=1 // pred_region
      %s163 = ssub.s32 256, 256
      %164 = vsyncadd [#allocation9], %s163
      %s165 = sshll.u32 [#allocation8], 4
      %s166 = int_to_ptr.vmem [resolvable:$true] %s165
      %171 = dma.vmem_to_hbm [thread:$0]  %s166, 256, %s4, [#allocation9], 128, 128, 8
    $region33: #{tpu_custom_call.1} parent=1 // pred_fallthru
      _
    // Predicated region
    $region34: #{tpu_custom_call.1} parent=1 // pred_check
      _
    $region35: #{tpu_custom_call.1} parent=1 // pred_check_branch
      %173 = sbr.rel (0) target = $region37
    $region36: #{tpu_custom_call.1} parent=1 // pred_region
      %174 = dma.done [#allocation4], 256
    $region37: #{tpu_custom_call.1} parent=1 // pred_fallthru
      _
    // Predicated region
    $region38: #{tpu_custom_call.1} parent=1 // pred_check
      _
    $region39: #{tpu_custom_call.1} parent=1 // pred_check_branch
      %176 = sbr.rel (0) target = $region41
    $region40: #{tpu_custom_call.1} parent=1 // pred_region
      %177 = dma.done [#allocation9], 256
    $region41: #{tpu_custom_call.1} parent=1 // pred_fallthru
      _
    %178 = vsyncpa [#allocation3], 1
    %179 = vsyncpa [#allocation6], 1
    %180 = vsyncpa [#allocation4], 1
    %181 = vsyncpa [#allocation9], 1

</llo_original>
